<compile_context>
chip_gen: v7x
topology: tpu7x:2x2x1
jax: 0.10.0
libtpu: 0.0.40
codegen_flags: <defaults>
</compile_context>

<pallas_src>
import functools

import jax
import jax.numpy as jnp
from jax.experimental import pallas as pl
from jax.experimental.pallas import tpu as pltpu

EPSILON = 1e-07
NUM_CLASSES = 2                 # hard-coded by F.one_hot(y_true, 2) in the module
DEFAULT_BLOCK_N = 256 * 1024    # 2 MiB of f32 logits per block (x2 double-buffers)


def _f1_loss_kernel(logits_ref, labels_ref, out_ref, acc_ref, *, n_total):
    """One grid step: accumulate sum(label), sum(p1), sum(label * p1)."""
    pid = pl.program_id(0)
    nblk = pl.num_programs(0)

    @pl.when(pid == 0)
    def _init():
        acc_ref[0] = 0.0
        acc_ref[1] = 0.0
        acc_ref[2] = 0.0

    block_n = logits_ref.shape[1]

    # Valid-lane mask: the last block may be partial; masked lanes contribute 0.
    lane = jax.lax.broadcasted_iota(jnp.int32, (1, block_n), 1)
    valid = (pid * block_n + lane) < n_total                        # (1, B) bool

    # Closed-form binary softmax: p1 = sigmoid(z1 - z0) = 1 / (1 + exp(z0 - z1)).
    z0 = logits_ref[0:1, :]                                         # (1, B) f32
    z1 = logits_ref[1:2, :]                                         # (1, B) f32
    p1_raw = 1.0 / (1.0 + jnp.exp(z0 - z1))                         # (1, B) f32
    p1 = jnp.where(valid, p1_raw, 0.0)

    lab_is_one = labels_ref[...].astype(jnp.int32) == 1             # (1, B) bool
    lab = jnp.where(jnp.logical_and(valid, lab_is_one), 1.0, 0.0)   # (1, B) f32
    lab_p1 = jnp.where(lab_is_one, p1, 0.0)                         # p1 already valid-masked

    acc_ref[0] += jnp.sum(lab)
    acc_ref[1] += jnp.sum(p1)
    acc_ref[2] += jnp.sum(lab_p1)

    @pl.when(pid == nblk - 1)
    def _finalize():
        n = jnp.float32(n_total)
        s_lab = acc_ref[0]      # sum(label)
        s_p1 = acc_ref[1]       # sum(p1)
        s_lp1 = acc_ref[2]      # sum(label * p1)

        # Per-class statistics reconstructed from the three sums.
        tp1 = s_lp1
        tp0 = n - s_lab - s_p1 + s_lp1
        fp1 = s_p1 - s_lp1      # sum((1 - label) * p1)
        fp0 = s_lab - s_lp1     # sum(label * (1 - p1)) = sum(label * p0 complement)
        fn1 = s_lab - s_lp1     # sum(label * (1 - p1))
        fn0 = s_p1 - s_lp1      # sum((1 - label) * p1)

        prec0 = tp0 / (tp0 + fp0 + EPSILON)
        prec1 = tp1 / (tp1 + fp1 + EPSILON)
        rec0 = tp0 / (tp0 + fn0 + EPSILON)
        rec1 = tp1 / (tp1 + fn1 + EPSILON)
        f1_0 = 2.0 * (prec0 * rec0) / (prec0 + rec0 + EPSILON)
        f1_1 = 2.0 * (prec1 * rec1) / (prec1 + rec1 + EPSILON)
        f1_0 = jnp.clip(f1_0, EPSILON, 1.0 - EPSILON)
        f1_1 = jnp.clip(f1_1, EPSILON, 1.0 - EPSILON)
        out_ref[0, 0] = 1.0 - 0.5 * (f1_0 + f1_1)


def f1_loss(y_pred, y_true, *, block_n=DEFAULT_BLOCK_N, interpret=False):
    """y_pred: (N, 2) float logits; y_true: (N,) int labels in {0, 1}."""
    assert y_pred.ndim == 2 and y_pred.shape[1] == NUM_CLASSES
    assert y_true.ndim == 1 and y_true.shape[0] == y_pred.shape[0]
    n = y_pred.shape[0]

    # Lane-dense layout: class on the tiny sublane axis, batch on the lane axis.
    logits = y_pred.astype(jnp.float32).T            # (2, N) f32
    labels = y_true.astype(jnp.int8).reshape(1, n)   # (1, N) int8 (1 B/row of label traffic)

    # Block size: a multiple of 128 lanes, or the full batch if it is smaller.
    if block_n < n:
        block_n = max(128, (block_n // 128) * 128)
    if block_n >= n:
        block_n = n
    grid = (pl.cdiv(n, block_n),)

    kernel = functools.partial(_f1_loss_kernel, n_total=n)

    out = pl.pallas_call(
        kernel,
        out_shape=jax.ShapeDtypeStruct((1, 1), jnp.float32),
        grid=grid,
        in_specs=[
            pl.BlockSpec((NUM_CLASSES, block_n), lambda i: (0, i)),
            pl.BlockSpec((1, block_n), lambda i: (0, i)),
        ],
        out_specs=pl.BlockSpec(memory_space=pltpu.SMEM),
        scratch_shapes=[pltpu.SMEM((3,), jnp.float32)],
        compiler_params=pltpu.CompilerParams(
            # Single reduction axis with carried SMEM state -> "arbitrary".
            dimension_semantics=("arbitrary",),
            # Explicit scoped-VMEM budget: safe on v5e (16 MiB default raised),
            # v6e (128 MiB phys) and v7x (64 MiB phys); blocks use ~5 MiB total.
            vmem_limit_bytes=32 * 1024 * 1024,
        ),
        cost_estimate=pl.CostEstimate(
            flops=10 * n,
            transcendentals=n,                          # one exp per row (sigmoid)
            bytes_accessed=n * (NUM_CLASSES * 4 + 1) + 4,
        ),
        interpret=interpret,
    )(logits, labels)
    return out[0, 0]


def _reference(y_pred, y_true):
    """Pure-JAX reference of the (intended) PyTorch forward."""
    y_true_oh = jax.nn.one_hot(y_true, NUM_CLASSES, dtype=jnp.float32)
    y_prob = jax.nn.softmax(y_pred.astype(jnp.float32), axis=1)
    tp = jnp.sum(y_true_oh * y_prob, axis=0)
    fp = jnp.sum((1.0 - y_true_oh) * y_prob, axis=0)
    fn = jnp.sum(y_true_oh * (1.0 - y_prob), axis=0)
    precision = tp / (tp + fp + EPSILON)
    recall = tp / (tp + fn + EPSILON)
    f1 = 2.0 * (precision * recall) / (precision + recall + EPSILON)
    f1 = jnp.clip(f1, EPSILON, 1.0 - EPSILON)
    return 1.0 - jnp.mean(f1)


if __name__ == "__main__":
    key = jax.random.PRNGKey(0)
    k_pred, k_true = jax.random.split(key)

    n = 300  # small, but > one 128-lane block so the gridded + masked path runs
    y_pred = jax.random.normal(k_pred, (n, NUM_CLASSES), dtype=jnp.float32)
    y_true = jax.random.randint(k_true, (n,), 0, NUM_CLASSES, dtype=jnp.int32)

    ref = _reference(y_pred, y_true)

    # Gridded path: 3 blocks of 128 lanes, last block partial (lane-masked).
    loss_tiled = f1_loss(y_pred, y_true, block_n=128)
    jax.block_until_ready(loss_tiled)
    assert jnp.allclose(loss_tiled, ref, atol=1e-5, rtol=1e-5), (loss_tiled, ref)

    # Default (single-block) path.
    loss = f1_loss(y_pred, y_true)
    jax.block_until_ready(loss)
    assert jnp.allclose(loss, ref, atol=1e-5, rtol=1e-5), (loss, ref)

    print("KERNEL_OK")
</pallas_src>

<mosaic_0001>
module attributes {stable_mosaic.version = 11 : i64} {
  func.func @_f1_loss_kernel(%arg0: i32, %arg1: memref<2x128xf32, #tpu.memory_space<vmem>>, %arg2: memref<1x128xi8, #tpu.memory_space<vmem>>, %arg3: memref<1x1xf32, #tpu.memory_space<smem>>, %arg4: memref<3xf32, #tpu.memory_space<smem>>) attributes {dimension_semantics = [#tpu.dimension_semantics<arbitrary>], iteration_bounds = array<i64: 3>, scalar_prefetch = 0 : i64, scratch_operands = 1 : i64, tpu.core_type = #tpu.core_type<tc>, window_params = [{transform_indices = @transform_0, window_bounds = array<i64: 2, 128>}, {transform_indices = @transform_1, window_bounds = array<i64: 1, 128>}, {transform_indices = @transform_2, window_bounds = array<i64: 1, 1>}]} {
    %c0_i32 = arith.constant 0 : i32
    %0 = arith.cmpi eq, %arg0, %c0_i32 : i32
    %1 = arith.extui %0 : i1 to i32
    %c0_i32_0 = arith.constant 0 : i32
    %2 = arith.cmpi ne, %1, %c0_i32_0 : i32
    scf.if %2 {
      %cst_19 = arith.constant 0.000000e+00 : f32
      %c0_20 = arith.constant 0 : index
      %53 = memref.load %arg4[%c0_20] : memref<3xf32, #tpu.memory_space<smem>>
      memref.store %cst_19, %arg4[%c0_20] : memref<3xf32, #tpu.memory_space<smem>>
      %cst_21 = arith.constant 0.000000e+00 : f32
      %c1_22 = arith.constant 1 : index
      %54 = memref.load %arg4[%c1_22] : memref<3xf32, #tpu.memory_space<smem>>
      memref.store %cst_21, %arg4[%c1_22] : memref<3xf32, #tpu.memory_space<smem>>
      %cst_23 = arith.constant 0.000000e+00 : f32
      %c2_24 = arith.constant 2 : index
      %55 = memref.load %arg4[%c2_24] : memref<3xf32, #tpu.memory_space<smem>>
      memref.store %cst_23, %arg4[%c2_24] : memref<3xf32, #tpu.memory_space<smem>>
    } else {
    }
    %3 = tpu.iota {dimensions = array<i32: 1>} : vector<1x128xi32>
    %c128_i32 = arith.constant 128 : i32
    %4 = arith.muli %arg0, %c128_i32 : i32
    %5 = vector.broadcast %4 : i32 to vector<1x128xi32>
    %6 = arith.addi %5, %3 : vector<1x128xi32>
    %c300_i32 = arith.constant 300 : i32
    %7 = vector.broadcast %c300_i32 : i32 to vector<1x128xi32>
    %8 = arith.cmpi slt, %6, %7 : vector<1x128xi32>
    %c0 = arith.constant 0 : index
    %c0_1 = arith.constant 0 : index
    %9 = vector.load %arg1[%c0, %c0_1] : memref<2x128xf32, #tpu.memory_space<vmem>>, vector<1x128xf32>
    %c1 = arith.constant 1 : index
    %c0_2 = arith.constant 0 : index
    %10 = vector.load %arg1[%c1, %c0_2] : memref<2x128xf32, #tpu.memory_space<vmem>>, vector<1x128xf32>
    %11 = arith.subf %9, %10 : vector<1x128xf32>
    %12 = math.exp %11 : vector<1x128xf32>
    %cst = arith.constant 1.000000e+00 : f32
    %13 = vector.broadcast %cst : f32 to vector<1x128xf32>
    %14 = arith.addf %13, %12 : vector<1x128xf32>
    %cst_3 = arith.constant 1.000000e+00 : f32
    %15 = vector.broadcast %cst_3 : f32 to vector<1x128xf32>
    %16 = arith.divf %15, %14 : vector<1x128xf32>
    %cst_4 = arith.constant 0.000000e+00 : f32
    %17 = vector.broadcast %cst_4 : f32 to vector<1x128xf32>
    %18 = arith.select %8, %16, %17 : vector<1x128xi1>, vector<1x128xf32>
    %c0_5 = arith.constant 0 : index
    %c0_6 = arith.constant 0 : index
    %19 = vector.load %arg2[%c0_5, %c0_6] : memref<1x128xi8, #tpu.memory_space<vmem>>, vector<1x128xi8>
    %20 = arith.extsi %19 : vector<1x128xi8> to vector<1x128xi32>
    %c1_i32 = arith.constant 1 : i32
    %21 = vector.broadcast %c1_i32 : i32 to vector<1x128xi32>
    %22 = arith.cmpi eq, %20, %21 : vector<1x128xi32>
    %23 = arith.andi %8, %22 : vector<1x128xi1>
    %cst_7 = arith.constant 1.000000e+00 : f32
    %cst_8 = arith.constant 0.000000e+00 : f32
    %24 = vector.broadcast %cst_7 : f32 to vector<1x128xf32>
    %25 = vector.broadcast %cst_8 : f32 to vector<1x128xf32>
    %26 = arith.select %23, %24, %25 : vector<1x128xi1>, vector<1x128xf32>
    %cst_9 = arith.constant 0.000000e+00 : f32
    %27 = vector.broadcast %cst_9 : f32 to vector<1x128xf32>
    %28 = arith.select %22, %18, %27 : vector<1x128xi1>, vector<1x128xf32>
    %c0_10 = arith.constant 0 : index
    %29 = memref.load %arg4[%c0_10] : memref<3xf32, #tpu.memory_space<smem>>
    %30 = vector.shape_cast %26 : vector<1x128xf32> to vector<1x1x128xf32>
    %cst_11 = arith.constant dense<0.000000e+00> : vector<1xf32>
    %31 = vector.multi_reduction <add>, %30, %cst_11 [1, 2] : vector<1x1x128xf32> to vector<1xf32>
    %32 = vector.shape_cast %31 : vector<1xf32> to vector<1x1x1xf32>
    %33 = vector.extract %32[0, 0, 0] : f32 from vector<1x1x1xf32>
    %34 = arith.addf %29, %33 : f32
    %c0_12 = arith.constant 0 : index
    %35 = memref.load %arg4[%c0_12] : memref<3xf32, #tpu.memory_space<smem>>
    memref.store %34, %arg4[%c0_12] : memref<3xf32, #tpu.memory_space<smem>>
    %c1_13 = arith.constant 1 : index
    %36 = memref.load %arg4[%c1_13] : memref<3xf32, #tpu.memory_space<smem>>
    %37 = vector.shape_cast %18 : vector<1x128xf32> to vector<1x1x128xf32>
    %cst_14 = arith.constant dense<0.000000e+00> : vector<1xf32>
    %38 = vector.multi_reduction <add>, %37, %cst_14 [1, 2] : vector<1x1x128xf32> to vector<1xf32>
    %39 = vector.shape_cast %38 : vector<1xf32> to vector<1x1x1xf32>
    %40 = vector.extract %39[0, 0, 0] : f32 from vector<1x1x1xf32>
    %41 = arith.addf %36, %40 : f32
    %c1_15 = arith.constant 1 : index
    %42 = memref.load %arg4[%c1_15] : memref<3xf32, #tpu.memory_space<smem>>
    memref.store %41, %arg4[%c1_15] : memref<3xf32, #tpu.memory_space<smem>>
    %c2 = arith.constant 2 : index
    %43 = memref.load %arg4[%c2] : memref<3xf32, #tpu.memory_space<smem>>
    %44 = vector.shape_cast %28 : vector<1x128xf32> to vector<1x1x128xf32>
    %cst_16 = arith.constant dense<0.000000e+00> : vector<1xf32>
    %45 = vector.multi_reduction <add>, %44, %cst_16 [1, 2] : vector<1x1x128xf32> to vector<1xf32>
    %46 = vector.shape_cast %45 : vector<1xf32> to vector<1x1x1xf32>
    %47 = vector.extract %46[0, 0, 0] : f32 from vector<1x1x1xf32>
    %48 = arith.addf %43, %47 : f32
    %c2_17 = arith.constant 2 : index
    %49 = memref.load %arg4[%c2_17] : memref<3xf32, #tpu.memory_space<smem>>
    memref.store %48, %arg4[%c2_17] : memref<3xf32, #tpu.memory_space<smem>>
    %c2_i32 = arith.constant 2 : i32
    %50 = arith.cmpi eq, %arg0, %c2_i32 : i32
    %51 = arith.extui %50 : i1 to i32
    %c0_i32_18 = arith.constant 0 : i32
    %52 = arith.cmpi ne, %51, %c0_i32_18 : i32
    scf.if %52 {
      %c0_19 = arith.constant 0 : index
      %53 = memref.load %arg4[%c0_19] : memref<3xf32, #tpu.memory_space<smem>>
      %c1_20 = arith.constant 1 : index
      %54 = memref.load %arg4[%c1_20] : memref<3xf32, #tpu.memory_space<smem>>
      %c2_21 = arith.constant 2 : index
      %55 = memref.load %arg4[%c2_21] : memref<3xf32, #tpu.memory_space<smem>>
      %cst_22 = arith.constant 3.000000e+02 : f32
      %56 = arith.subf %cst_22, %53 : f32
      %57 = arith.subf %56, %54 : f32
      %58 = arith.addf %57, %55 : f32
      %59 = arith.subf %54, %55 : f32
      %60 = arith.subf %53, %55 : f32
      %61 = arith.subf %53, %55 : f32
      %62 = arith.subf %54, %55 : f32
      %63 = arith.addf %58, %60 : f32
      %cst_23 = arith.constant 1.000000e-07 : f32
      %64 = arith.addf %63, %cst_23 : f32
      %65 = arith.divf %58, %64 : f32
      %66 = arith.addf %55, %59 : f32
      %cst_24 = arith.constant 1.000000e-07 : f32
      %67 = arith.addf %66, %cst_24 : f32
      %68 = arith.divf %55, %67 : f32
      %69 = arith.addf %58, %62 : f32
      %cst_25 = arith.constant 1.000000e-07 : f32
      %70 = arith.addf %69, %cst_25 : f32
      %71 = arith.divf %58, %70 : f32
      %72 = arith.addf %55, %61 : f32
      %cst_26 = arith.constant 1.000000e-07 : f32
      %73 = arith.addf %72, %cst_26 : f32
      %74 = arith.divf %55, %73 : f32
      %75 = arith.mulf %65, %71 : f32
      %cst_27 = arith.constant 2.000000e+00 : f32
      %76 = arith.mulf %cst_27, %75 : f32
      %77 = arith.addf %65, %71 : f32
      %cst_28 = arith.constant 1.000000e-07 : f32
      %78 = arith.addf %77, %cst_28 : f32
      %79 = arith.divf %76, %78 : f32
      %80 = arith.mulf %68, %74 : f32
      %cst_29 = arith.constant 2.000000e+00 : f32
      %81 = arith.mulf %cst_29, %80 : f32
      %82 = arith.addf %68, %74 : f32
      %cst_30 = arith.constant 1.000000e-07 : f32
      %83 = arith.addf %82, %cst_30 : f32
      %84 = arith.divf %81, %83 : f32
      %cst_31 = arith.constant 1.000000e-07 : f32
      %cst_32 = arith.constant 0.99999988 : f32
      %85 = arith.maximumf %cst_31, %79 : f32
      %86 = arith.minimumf %cst_32, %85 : f32
      %cst_33 = arith.constant 1.000000e-07 : f32
      %cst_34 = arith.constant 0.99999988 : f32
      %87 = arith.maximumf %cst_33, %84 : f32
      %88 = arith.minimumf %cst_34, %87 : f32
      %89 = arith.addf %86, %88 : f32
      %cst_35 = arith.constant 5.000000e-01 : f32
      %90 = arith.mulf %cst_35, %89 : f32
      %cst_36 = arith.constant 1.000000e+00 : f32
      %91 = arith.subf %cst_36, %90 : f32
      %c0_37 = arith.constant 0 : index
      %c0_38 = arith.constant 0 : index
      %92 = memref.load %arg3[%c0_37, %c0_38] : memref<1x1xf32, #tpu.memory_space<smem>>
      memref.store %91, %arg3[%c0_37, %c0_38] : memref<1x1xf32, #tpu.memory_space<smem>>
    } else {
    }
    return
  }
  func.func @transform_0(%arg0: i32) -> (i32, i32) {
    %c0_i32 = arith.constant 0 : i32
    %c0_i32_0 = arith.constant 0 : i32
    return %c0_i32, %arg0 : i32, i32
  }
  func.func @transform_1(%arg0: i32) -> (i32, i32) {
    %c0_i32 = arith.constant 0 : i32
    %c0_i32_0 = arith.constant 0 : i32
    return %c0_i32, %arg0 : i32, i32
  }
  func.func @transform_2(%arg0: i32) -> (i32, i32) {
    %c0_i32 = arith.constant 0 : i32
    %c0_i32_0 = arith.constant 0 : i32
    %c0_i32_1 = arith.constant 0 : i32
    return %c0_i32, %c0_i32_0 : i32, i32
  }
}

</mosaic_0001>

<llo_original>
// kernel: tpu_custom_call.1
$region0: #{tpu_custom_call.1}
  #allocation0 [shape = 'u32[]', space=smem, size = 0x4, offset = 0x4, fixed_abs, tag = 'smem constant byte address 0x4 - core index']
  #allocation1 [shape = 'u32[144,128]{1,0:T(1,128)}', space=vmem, size = 0x12000, scoped, tag = 'internal scratch']
  #allocation2 [shape = 'f32[3]{0:T(128)}', space=smem, size = 0x200, scoped, tag = 'scratch operand']
  %s0 = inlined_call_operand.hbm [shape: f32[2,300], index: 0, kind: input, shape index: {}]
  %s1 = inlined_call_operand.vmem [shape: s8[1,300], index: 1, kind: input, shape index: {}]
  %s2 = inlined_call_operand.hbm [shape: f32[1,1], index: 2, kind: output, shape index: {}]
  %s3 = sld [smem:[#allocation0]]
  $region53: #{tpu_custom_call.1} parent=0
    _
  %s5 = ssub.s32 1, %s3
  %s6 = scalar_select 0, %s5, %s3
  $region1: #{tpu_custom_call.1} parent=0
    #allocation3 [shape = 'u8[2048]{0}', space=vmem, size = 0x800, scoped, tag = 'input window, operand 0']
    #allocation4 [shape = 's32[2]{0}', space=sflag, size = 0x8, scoped, tag = 'scoped memory for tpu_custom_call.1']
    #allocation5 [shape = 's32[2]{0}', space=sflag, size = 0x8, scoped, tag = 'scoped memory for tpu_custom_call.1']
    #allocation6 [shape = 'u8[512]{0}', space=smem, size = 0x200, scoped, tag = 'output window, operand 0, single buffered']
    %7 = vsyncpa [#allocation4], 0
    %s8 = scalar_lea.sflag [#allocation4], 1
    %9 = vsyncpa %s8, 0
    %10 = vsyncpa [#allocation5], 0
    loop: start=0, step=1, limit=5
    $region2: #{tpu_custom_call.1} parent=1 // loop_pre_header
      _
    $region3: #{tpu_custom_call.1} parent=1 // loop_header
      %s12 = sphi 0, %s16
      %p13 = scmp.ge.s32.totalorder %s12, 5
      %s22 = sphi 0, %s24
      %s25 = sphi 0, %s22
      %s26 = sphi 0, %s25
      %s42 = sphi 0, %s26
      %s48 = sphi 0, %s50
      %s51 = sphi 0, %s48
      %s52 = sphi 0, %s51
      %s68 = sphi 0, %s52
      %s72 = sphi 0, %s72
      %s74 = sphi 0, %s72
      %s75 = sphi 0, %s74
      %s89 = sphi 0, %s75
    $region4: #{tpu_custom_call.1} parent=1 // loop_header_branch
      %15 = sbr.rel (%p13) target = $region8
    $region5: #{tpu_custom_call.1} parent=1 // loop_body
      %s17 = ssub.s32 %s12, 1
      %s18 = ssub.s32 %s12, 2
      %s19 = sadd.s32 %s12, 1
      %s20 = ssub.s32 %s12, %s19
      %p21 = scmp.eq.s32.totalorder %s20, 0
      %s23 = sadd.s32 %s22, 1
      %s24 = scalar_select %p21, %s22, %s23
      %p27 = pneg %p21
      %p28 = scmp.eq.s32.totalorder %s12, 2
      %p29 = por %p27, %p28
      %p30 = scmp.ne.s32.totalorder %s22, %s25
      %p31 = scmp.eq.s32.totalorder %s12, 0
      %p32 = por %p30, %p31
      %p33 = scmp.ne.s32.totalorder %s22, %s25
      %p34 = scmp.eq.s32.totalorder %s17, 2
      %p35 = por %p33, %p34
      %p36 = scmp.ne.s32.totalorder %s25, %s26
      %p37 = scmp.eq.s32.totalorder %s17, 0
      %p38 = por %p36, %p37
      %p39 = scmp.ne.s32.totalorder %s25, %s26
      %p40 = scmp.eq.s32.totalorder %s18, 2
      %p41 = por %p39, %p40
      %p43 = scmp.ne.s32.totalorder %s26, %s42
      %p44 = scmp.eq.s32.totalorder %s18, 0
      %p45 = por %p43, %p44
      %s46 = ssub.s32 %s12, %s19
      %p47 = scmp.eq.s32.totalorder %s46, 0
      %s49 = sadd.s32 %s48, 1
      %s50 = scalar_select %p47, %s48, %s49
      %p53 = pneg %p47
      %p54 = scmp.eq.s32.totalorder %s12, 2
      %p55 = por %p53, %p54
      %p56 = scmp.ne.s32.totalorder %s48, %s51
      %p57 = scmp.eq.s32.totalorder %s12, 0
      %p58 = por %p56, %p57
      %p59 = scmp.ne.s32.totalorder %s48, %s51
      %p60 = scmp.eq.s32.totalorder %s17, 2
      %p61 = por %p59, %p60
      %p62 = scmp.ne.s32.totalorder %s51, %s52
      %p63 = scmp.eq.s32.totalorder %s17, 0
      %p64 = por %p62, %p63
      %p65 = scmp.ne.s32.totalorder %s51, %s52
      %p66 = scmp.eq.s32.totalorder %s18, 2
      %p67 = por %p65, %p66
      %p69 = scmp.ne.s32.totalorder %s52, %s68
      %p70 = scmp.eq.s32.totalorder %s18, 0
      %p71 = por %p69, %p70
      %s73 = sadd.s32 %s72, 1
      %p76 = scmp.eq.s32.totalorder %s12, 2
      %p77 = scmp.ne.s32.totalorder %s72, %s74
      %p78 = scmp.eq.s32.totalorder %s12, 0
      %p79 = por %p77, %p78
      %p80 = scmp.ne.s32.totalorder %s72, %s74
      %p81 = scmp.eq.s32.totalorder %s17, 2
      %p82 = por %p80, %p81
      %p83 = scmp.ne.s32.totalorder %s74, %s75
      %p84 = scmp.eq.s32.totalorder %s17, 0
      %p85 = por %p83, %p84
      %p86 = scmp.ne.s32.totalorder %s74, %s75
      %p87 = scmp.eq.s32.totalorder %s18, 2
      %p88 = por %p86, %p87
      %p90 = scmp.ne.s32.totalorder %s75, %s89
      %p91 = scmp.eq.s32.totalorder %s18, 0
      %p92 = por %p90, %p91
      %p93 = scmp.le.s32.totalorder 1, %s12
      %p94 = scmp.lt.s32.totalorder %s12, 4
      %p95 = pnand %p93, %p94
      %p96 = pneg %p95
      // Predicated region
      $region9: #{tpu_custom_call.1} parent=5 // pred_check
        _
      $region10: #{tpu_custom_call.1} parent=5 // pred_check_branch
        %98 = sbr.rel (%p95) target = $region12
      $region11: #{tpu_custom_call.1} parent=5 // pred_region
        %s99 = ssub.s32 %s12, 1
      $region12: #{tpu_custom_call.1} parent=5 // pred_fallthru
        _
      %p100 = scmp.lt.s32.totalorder %s12, 3
      // Predicated region
      $region13: #{tpu_custom_call.1} parent=5 // pred_check
        %p101 = pneg %p100
      $region14: #{tpu_custom_call.1} parent=5 // pred_check_branch
        %103 = sbr.rel (%p101) target = $region16
      $region15: #{tpu_custom_call.1} parent=5 // pred_region
        // Predicated region
        $region17: #{tpu_custom_call.1} parent=15 // pred_check
          %p104 = pneg %p32
        $region18: #{tpu_custom_call.1} parent=15 // pred_check_branch
          %106 = sbr.rel (%p104) target = $region20
        $region19: #{tpu_custom_call.1} parent=15 // pred_region
          %s107 = sand.u32 %s22, 1
          %s108 = scalar_lea.sflag [#allocation4], %s107
          %s109 = sand.u32 %s22, 1
          %s110 = smul.addr %s109, 2
          %s111 = scalar_lea.vmem [#allocation3], %s110
          %s113 = ssub.s32 32, 32
          %114 = vsyncadd %s108, %s113
          %s115 = smul.addr %s12, 32
          %s116 = scalar_lea.hbm %s0, %s115
          %s118 = sshll.u32 %s111, 4
          %s119 = int_to_ptr.vmem [resolvable:$true] %s118
          %121 = dma.hbm_to_vmem [thread:$0]  %s116, 32, %s119, %s108
        $region20: #{tpu_custom_call.1} parent=15 // pred_fallthru
          _
        // Predicated region
        $region21: #{tpu_custom_call.1} parent=15 // pred_check
          %p122 = pneg %p58
        $region22: #{tpu_custom_call.1} parent=15 // pred_check_branch
          %124 = sbr.rel (%p122) target = $region24
        $region23: #{tpu_custom_call.1} parent=15 // pred_region
          %p125 = scmp.lt.s32.totalorder %s12, 2
          %s126 = scalar_select %p125, %s12, 2
          %s127 = scalar_lea.vmem %s1, %s126
        $region24: #{tpu_custom_call.1} parent=15 // pred_fallthru
          _
      $region16: #{tpu_custom_call.1} parent=5 // pred_fallthru
        _
      %p128 = scmp.le.s32.totalorder 1, %s12
      %p129 = scmp.lt.s32.totalorder %s12, 4
      %p130 = pnand %p128, %p129
      %p131 = pneg %p130
      // Predicated region
      $region25: #{tpu_custom_call.1} parent=5 // pred_check
        _
      $region26: #{tpu_custom_call.1} parent=5 // pred_check_branch
        %133 = sbr.rel (%p130) target = $region28
      $region27: #{tpu_custom_call.1} parent=5 // pred_region
        %s134 = ssub.s32 %s12, 1
        %s135 = sand.u32 %s25, 1
        %s136 = scalar_lea.sflag [#allocation4], %s135
        %s137 = sand.u32 %s25, 1
        %s138 = smul.addr %s137, 2
        %s139 = scalar_lea.vmem [#allocation3], %s138
        // Predicated region
        $region29: #{tpu_custom_call.1} parent=27 // pred_check
          %p140 = pneg %p38
        $region30: #{tpu_custom_call.1} parent=27 // pred_check_branch
          %142 = sbr.rel (%p140) target = $region32
        $region31: #{tpu_custom_call.1} parent=27 // pred_region
          %143 = dma.done %s136, 32
        $region32: #{tpu_custom_call.1} parent=27 // pred_fallthru
          _
        %s144 = sand.u32 %s25, 1
        %s145 = scalar_lea.sflag [#allocation4], %s144
        %s146 = sand.u32 %s25, 1
        %s147 = smul.addr %s146, 2
        %s148 = scalar_lea.vmem [#allocation3], %s147
        %p149 = pneg %p38
        %p150 = pneg %p35
        %p151 = scmp.lt.s32.totalorder %s17, 2
        %s152 = scalar_select %p151, %s17, 2
        %s153 = scalar_lea.vmem %s1, %s152
        %p154 = pneg %p64
        %p155 = pneg %p61
        %p156 = pneg %p85
        %p157 = pneg %p82
        %p158 = scmp.lt.s32.totalorder %s17, 2
        %s159 = scalar_select %p158, %s17, 2
        %s160 = scalar_lea.vmem %s1, %s159
        %p161 = scmp.eq.s32.totalorder %s17, 0
        // Predicated region
        $region33: #{tpu_custom_call.1} parent=27 // pred_check
          %p162 = pneg %p161
        $region34: #{tpu_custom_call.1} parent=27 // pred_check_branch
          %164 = sbr.rel (%p162) target = $region36
        $region35: #{tpu_custom_call.1} parent=27 // pred_region
          %s165 = scalar_lea.smem [#allocation2], 0
          %166 = sst [smem:[%s165]] 0.0
          %s167 = scalar_lea.smem [#allocation2], 1
          %168 = sst [smem:[%s167]] 0.0
          %s169 = scalar_lea.smem [#allocation2], 2
          %170 = sst [smem:[%s169]] 0.0
        $region36: #{tpu_custom_call.1} parent=27 // pred_fallthru
          _
        %v171 = vlaneseq
        %v172 = vand.u32 %v171, 127
        %s173 = smul.u32 %s17, 128
        %v174 = vstv %s173
        %v175 = vadd.s32 %v174, %v172
        %vm176 = vcmp.lt.s32.totalorder %v175, 300
        %v177 = vld [vmem:[%s139] sm:$0x1]
        %v178 = vld [vmem:[%s139 + $0x1] sm:$0x1]
        %v179 = vsub.f32 %v177, %v178
        %v180 = vmul.f32 %v179, 1.442695
        %v181 = vpow.pop %v180
        %v182 = vadd.f32 %v181, 1.0
        %v183 = vrcp.pop %v182
        %v184 = vmul.f32 1.0, %v183
        %v185 = vsel %vm176, %v184, 0.0
        %v186 = vld [vmem:[%s160] sm:$0x1]
        %v187 = vunpack.c.0.s8 %v186
        %vm188 = vcmp.eq.s32.totalorder %v187, 1
        %vm189 = vmand %vm176, %vm188
        %v190 = vsel %vm189, 1.0, 0.0
        %v191 = vsel %vm188, %v185, 0.0
        %s192 = sld [smem:[#allocation2]]
        %vm193 = vcmask 1040384
        %v194 = vsel %vm193, %v190, 0.0
        %195 = vadd.xlane.f32.xlu0 %v194
        %v196 = vpop.xlane.xlu0 %195
        %v197 = vrot.slane %v196, 4
        %v198 = vadd.f32 %v196, %v197
        %v199 = vrot.slane %v198, 2
        %v200 = vadd.f32 %v198, %v199
        %v201 = vrot.slane %v200, 1
        %v202 = vadd.f32 %v200, %v201
        %s203 = vtos %v202
        %s204 = sadd.f32 %s192, %s203
        %s205 = scalar_lea.smem [#allocation2], 0
        %206 = sst [smem:[%s205]] %s204
        %s207 = sld [smem:[#allocation2 + $0x1]]
        %v208 = vsel %vm193, %v185, 0.0
        %209 = vadd.xlane.f32.xlu0 %v208
        %v210 = vpop.xlane.xlu0 %209
        %v211 = vrot.slane %v210, 4
        %v212 = vadd.f32 %v210, %v211
        %v213 = vrot.slane %v212, 2
        %v214 = vadd.f32 %v212, %v213
        %v215 = vrot.slane %v214, 1
        %v216 = vadd.f32 %v214, %v215
        %s217 = vtos %v216
        %s218 = sadd.f32 %s207, %s217
        %s219 = scalar_lea.smem [#allocation2], 1
        %220 = sst [smem:[%s219]] %s218
        %s221 = sld [smem:[#allocation2 + $0x2]]
        %v222 = vsel %vm193, %v191, 0.0
        %223 = vadd.xlane.f32.xlu0 %v222
        %v224 = vpop.xlane.xlu0 %223
        %v225 = vrot.slane %v224, 4
        %v226 = vadd.f32 %v224, %v225
        %v227 = vrot.slane %v226, 2
        %v228 = vadd.f32 %v226, %v227
        %v229 = vrot.slane %v228, 1
        %v230 = vadd.f32 %v228, %v229
        %s231 = vtos %v230
        %s232 = sadd.f32 %s221, %s231
        %s233 = scalar_lea.smem [#allocation2], 2
        %234 = sst [smem:[%s233]] %s232
        %p235 = scmp.eq.s32.totalorder %s17, 2
        // Predicated region
        $region37: #{tpu_custom_call.1} parent=27 // pred_check
          %p236 = pneg %p235
        $region38: #{tpu_custom_call.1} parent=27 // pred_check_branch
          %238 = sbr.rel (%p236) target = $region40
        $region39: #{tpu_custom_call.1} parent=27 // pred_region
          %s239 = sld [smem:[#allocation2]]
          %s240 = sld [smem:[#allocation2 + $0x1]]
          %s241 = sld [smem:[#allocation2 + $0x2]]
          %s242 = ssub.f32 300.0, %s239
          %s243 = ssub.f32 %s242, %s240
          %s244 = sadd.f32 %s243, %s241
          %s245 = ssub.f32 %s240, %s241
          %s246 = ssub.f32 %s239, %s241
          %s247 = sadd.f32 %s244, %s246
          %s248 = sadd.f32 %s247, 1e-07
          %v249 = vstv %s248
          %v250 = vrcp.pop %v249
          %s251 = vtos %v250
          %s252 = smul.f32 %s244, %s251
          %s253 = sadd.f32 %s241, %s245
          %s254 = sadd.f32 %s253, 1e-07
          %v255 = vstv %s254
          %v256 = vrcp.pop %v255
          %s257 = vtos %v256
          %s258 = smul.f32 %s241, %s257
          %s259 = sadd.f32 %s244, %s245
          %s260 = sadd.f32 %s259, 1e-07
          %v261 = vstv %s260
          %v262 = vrcp.pop %v261
          %s263 = vtos %v262
          %s264 = smul.f32 %s244, %s263
          %s265 = sadd.f32 %s241, %s246
          %s266 = sadd.f32 %s265, 1e-07
          %v267 = vstv %s266
          %v268 = vrcp.pop %v267
          %s269 = vtos %v268
          %s270 = smul.f32 %s241, %s269
          %s271 = smul.f32 %s252, %s264
          %s272 = smul.f32 %s271, 2.0
          %s273 = sadd.f32 %s252, %s264
          %s274 = sadd.f32 %s273, 1e-07
          %v275 = vstv %s274
          %v276 = vrcp.pop %v275
          %s277 = vtos %v276
          %s278 = smul.f32 %s272, %s277
          %s279 = smul.f32 %s258, %s270
          %s280 = smul.f32 %s279, 2.0
          %s281 = sadd.f32 %s258, %s270
          %s282 = sadd.f32 %s281, 1e-07
          %v283 = vstv %s282
          %v284 = vrcp.pop %v283
          %s285 = vtos %v284
          %s286 = smul.f32 %s280, %s285
          %s287 = smax.f32 %s278, 1e-07
          %s288 = smin.f32 %s287, 0.9999999
          %s289 = smax.f32 %s286, 1e-07
          %s290 = smin.f32 %s289, 0.9999999
          %s291 = sadd.f32 %s288, %s290
          %s292 = smul.f32 %s291, 0.5
          %s293 = ssub.f32 1.0, %s292
          %s294 = scalar_lea.smem [#allocation6], 0
          %295 = sst [smem:[%s294]] %s293
        $region40: #{tpu_custom_call.1} parent=27 // pred_fallthru
          _
        // Predicated region
        $region41: #{tpu_custom_call.1} parent=27 // pred_check
          %p296 = pneg %p82
        $region42: #{tpu_custom_call.1} parent=27 // pred_check_branch
          %298 = sbr.rel (%p296) target = $region44
        $region43: #{tpu_custom_call.1} parent=27 // pred_region
          %s300 = ssub.s32 16, 16
          %301 = vsyncadd [#allocation5], %s300
          %304 = dma.smem_to_hbm [#allocation6], 16, %s2, [#allocation5]
        $region44: #{tpu_custom_call.1} parent=27 // pred_fallthru
          _
        // Predicated region
        $region45: #{tpu_custom_call.1} parent=27 // pred_check
          %p305 = pneg %p82
        $region46: #{tpu_custom_call.1} parent=27 // pred_check_branch
          %307 = sbr.rel (%p305) target = $region48
        $region47: #{tpu_custom_call.1} parent=27 // pred_region
          %308 = dma.done [#allocation5], 16
        $region48: #{tpu_custom_call.1} parent=27 // pred_fallthru
          _
        %309 = sfence
      $region28: #{tpu_custom_call.1} parent=5 // pred_fallthru
        _
      %p310 = scmp.le.s32.totalorder 2, %s12
      // Predicated region
      $region49: #{tpu_custom_call.1} parent=5 // pred_check
        %p311 = pneg %p310
      $region50: #{tpu_custom_call.1} parent=5 // pred_check_branch
        %313 = sbr.rel (%p311) target = $region52
      $region51: #{tpu_custom_call.1} parent=5 // pred_region
        %s314 = ssub.s32 %s12, 2
      $region52: #{tpu_custom_call.1} parent=5 // pred_fallthru
        _
    $region6: #{tpu_custom_call.1} parent=1 // loop_footer
      %s16 = sadd.s32 1, %s12
    $region7: #{tpu_custom_call.1} parent=1 // loop_footer_branch
      %11 = sbr.rel target = $region3
    $region8: #{tpu_custom_call.1} parent=1 // loop_exit
      _
    %315 = vsyncpa [#allocation4], 1
    %s316 = scalar_lea.sflag [#allocation4], 1
    %317 = vsyncpa %s316, 1
    %318 = vsyncpa [#allocation5], 1
    %s319 = scalar_lea.sflag [#allocation5], 1
    %320 = vsyncpa %s319, 1

</llo_original>
